<compile_context>
chip_gen: v5e
topology: v5e:2x2
jax: 0.10.0
libtpu: 0.0.40
codegen_flags: <defaults>
</compile_context>

<pallas_src>
import functools

import jax
import jax.numpy as jnp
from jax.experimental import pallas as pl
from jax.experimental.pallas import tpu as pltpu


def _pick_batch_block(n, c, cap=4):
    """Largest divisor of n that is <= cap, preferring 8-aligned BN*C blocks.

    cap is kept small so the static per-batch unroll never keeps more than a
    few (Q, TP)-sized interpolation matrices live at once.
    """
    for bn in range(min(n, cap), 0, -1):
        if n % bn == 0 and (bn * c) % 8 == 0:
            return bn
    for bn in range(min(n, cap), 0, -1):
        if n % bn == 0:
            return bn
    return 1


def _affine_kernel(th_ref, x_ref, out_ref, *, H, W, C, BN, m_dtype, precision):
    # th_ref : (6*N,) f32, SMEM scalar prefetch: tanh(theta)*scale + init
    # x_ref  : (BN*C, Q) lane-dense flattened input block (Q = H*W)
    # out_ref: (BN*C, TP) lane-dense strip of output pixels
    Q = H * W
    TP = out_ref.shape[-1]

    n_blk = pl.program_id(0)
    p_blk = pl.program_id(1)

    # Flat output-pixel indices of this strip, along lanes.
    pp = p_blk * TP + jax.lax.broadcasted_iota(jnp.int32, (1, 1, TP), 2)
    ppf = pp.astype(jnp.float32)
    # oy = pp // W, ox = pp % W via exact f32 math (asserted H*W < 2**24).
    oyf = jnp.floor(ppf / W)
    oxf = ppf - oyf * W
    # F.affine_grid, align_corners=False: normalized coords at pixel centers.
    yy = (2.0 * oyf + 1.0) / H - 1.0
    xx = (2.0 * oxf + 1.0) / W - 1.0

    # Two-hot factor iotas, built directly in 3-D (no reshapes of tiled dims).
    h_iota = jax.lax.broadcasted_iota(jnp.int32, (H, 1, TP), 0)
    w_iota = jax.lax.broadcasted_iota(jnp.int32, (1, W, TP), 1)

    # Separable build needs the (H, W, TP) -> (Q, TP) collapse to be a layout
    # no-op: W must be a multiple of the sublane tile for m_dtype.
    sub = 16 if jnp.dtype(m_dtype).itemsize == 2 else 8
    separable = (W % sub == 0)
    if not separable:
        q_iota = jax.lax.broadcasted_iota(jnp.int32, (Q, TP), 0)

    # Cast the whole x block once, outside the per-batch loop.
    x_all = x_ref[...].astype(m_dtype)  # (BN*C, Q)

    for b in range(BN):  # BN is capped small; static slices are free
        n = n_blk * BN + b
        t0 = th_ref[6 * n + 0]
        t1 = th_ref[6 * n + 1]
        t2 = th_ref[6 * n + 2]
        t3 = th_ref[6 * n + 3]
        t4 = th_ref[6 * n + 4]
        t5 = th_ref[6 * n + 5]

        gx = t0 * xx + t1 * yy + t2      # (1, 1, TP)
        gy = t3 * xx + t4 * yy + t5

        # F.grid_sample bilinear, align_corners=False: unnormalize to input px.
        ix = ((gx + 1.0) * W - 1.0) * 0.5
        iy = ((gy + 1.0) * H - 1.0) * 0.5
        ix0f = jnp.floor(ix)
        iy0f = jnp.floor(iy)
        wx1 = ix - ix0f
        wx0 = 1.0 - wx1
        wy1 = iy - iy0f
        wy0 = 1.0 - wy1
        ix0 = ix0f.astype(jnp.int32)
        iy0 = iy0f.astype(jnp.int32)
        ix1 = ix0 + 1
        iy1 = iy0 + 1

        if separable:
            # Row / column two-hot factors.  Zeros padding is implicit: the
            # iotas live in [0,H) / [0,W), so out-of-range corner indices never
            # match and contribute exactly 0.
            ry = (jnp.where(h_iota == iy0, wy0, 0.0)
                  + jnp.where(h_iota == iy1, wy1, 0.0)).astype(m_dtype)  # (H,1,TP)
            rx = (jnp.where(w_iota == ix0, wx0, 0.0)
                  + jnp.where(w_iota == ix1, wx1, 0.0)).astype(m_dtype)  # (1,W,TP)
            # Khatri-Rao along the pixel axis: M[h*W+w, p] = Ry[h,p]*Rx[w,p]
            # -- one multiply per (Q, TP) element.
            m = (ry * rx).reshape(Q, TP)
        else:
            # Fallback for W not sublane-aligned: per-corner one-hot build.
            def corner(iyc, ixc, w):
                valid = (iyc >= 0) & (iyc < H) & (ixc >= 0) & (ixc < W)
                q = jnp.where(valid, iyc * W + ixc, -1).reshape(1, TP)
                wv = w.reshape(1, TP).astype(m_dtype)
                return jnp.where(q_iota == q, wv, 0.0)
            m = (corner(iy0, ix0, wy0 * wx0) + corner(iy0, ix1, wy0 * wx1)
                 + corner(iy1, ix0, wy1 * wx0) + corner(iy1, ix1, wy1 * wx1))

        x_b = x_all[b * C:(b + 1) * C, :]                       # (C, Q)
        res = jnp.dot(x_b, m, preferred_element_type=jnp.float32,
                      precision=precision)                      # (C, TP)
        out_ref[b * C:(b + 1) * C, :] = res.astype(out_ref.dtype)


def affine(x, theta, init, scale=None, padding_mode="zeros",
           precision=None, m_dtype=None, batch_block=None, max_pixel_tile=512):
    """Pallas equivalent of Affine.forward(x, theta, init, scale).

    Two coherent configs:
      * fast  (default): bf16 M / bf16 x, DEFAULT MXU precision (~1e-2 abs err).
        Recommended on v6e / v7x.  On v5e pass m_dtype=jnp.float32.
      * exact: precision=jax.lax.Precision.HIGHEST -> f32 M, full f32 accuracy.
    """
    assert padding_mode == "zeros"  # TODO(synk): 'border'/'reflection' padding not implemented
    N, C, H, W = x.shape
    P = H * W
    assert P < (1 << 24), "f32 index math requires H*W < 2**24"

    exact = precision in (jax.lax.Precision.HIGHEST, "highest")
    if m_dtype is None:
        m_dtype = jnp.float32 if exact else jnp.bfloat16

    # theta = tanh(theta) * scale + init -- 6 scalars per batch element,
    # computed in plain JAX and fed through 1-D SMEM scalar prefetch.
    theta2 = jnp.asarray(theta, jnp.float32).reshape(N, 6)
    init2 = jnp.asarray(init, jnp.float32).reshape(1, 6)
    th = jnp.tanh(theta2)
    if scale is not None:
        th = th * jnp.asarray(scale, jnp.float32)  # NOTE: scalar scale only
    th = (th + init2).reshape(-1)                  # (6*N,) -- no SMEM lane padding

    BN = batch_block if batch_block is not None else _pick_batch_block(N, C)
    assert N % BN == 0, "batch_block must divide N"

    # Strip-mine the output-pixel axis so M = (Q, TP) stays small in VMEM.
    if P <= max_pixel_tile:
        TP = P
    else:
        TP = max_pixel_tile
        assert TP % 128 == 0, "pixel tile must be lane-aligned"
    num_p = pl.cdiv(P, TP)
    # Core-aware grid: never ship a (1,1) grid -- split the pixel axis so both
    # TensorCores (v7x megacore) get work and the DMA pipeline overlaps.
    if (N // BN) * num_p < 2 and P % 256 == 0:
        TP = P // 2
        num_p = 2
    # TODO(synk): for large images (Q >> 1024), restrict each strip's M to the
    # band of reachable input rows (or DMA row-gather) and set vmem_limit_bytes
    # explicitly -- M is quadratic in H*W.

    # Fold C into the sublane-blocked dim: blocks are (BN*C, ...) -> 8-aligned.
    x_flat = x.reshape(N * C, P)

    kernel = functools.partial(_affine_kernel, H=H, W=W, C=C, BN=BN,
                               m_dtype=m_dtype, precision=precision)

    out_flat = pl.pallas_call(
        kernel,
        out_shape=jax.ShapeDtypeStruct((N * C, P), x.dtype),
        grid_spec=pltpu.PrefetchScalarGridSpec(
            num_scalar_prefetch=1,
            grid=(N // BN, num_p),
            in_specs=[pl.BlockSpec((BN * C, P), lambda n, p, th_s: (n, 0))],
            out_specs=pl.BlockSpec((BN * C, TP), lambda n, p, th_s: (n, p)),
        ),
        compiler_params=pltpu.CompilerParams(
            dimension_semantics=("parallel", "parallel")),
    )(th, x_flat)

    return out_flat.reshape(N, C, H, W)


def _affine_ref(x, theta, init, scale=None):
    """Pure-JAX reference (same math as torch affine_grid + grid_sample)."""
    N, C, H, W = x.shape
    th = jnp.tanh(theta)
    if scale is not None:
        th = th * scale
    th = th.reshape(N, 2, 3) + jnp.reshape(init, (1, 2, 3))

    ys = (2.0 * jnp.arange(H, dtype=jnp.float32) + 1.0) / H - 1.0
    xs = (2.0 * jnp.arange(W, dtype=jnp.float32) + 1.0) / W - 1.0
    yy, xx = jnp.meshgrid(ys, xs, indexing="ij")

    def sample_one(xi, thi):
        gx = thi[0, 0] * xx + thi[0, 1] * yy + thi[0, 2]
        gy = thi[1, 0] * xx + thi[1, 1] * yy + thi[1, 2]
        ix = ((gx + 1.0) * W - 1.0) * 0.5
        iy = ((gy + 1.0) * H - 1.0) * 0.5
        ix0 = jnp.floor(ix); iy0 = jnp.floor(iy)
        wx1 = ix - ix0; wx0 = 1.0 - wx1
        wy1 = iy - iy0; wy0 = 1.0 - wy1
        ix0 = ix0.astype(jnp.int32); iy0 = iy0.astype(jnp.int32)
        ix1 = ix0 + 1; iy1 = iy0 + 1

        def g(iyc, ixc, w):
            valid = (iyc >= 0) & (iyc < H) & (ixc >= 0) & (ixc < W)
            v = xi[:, jnp.clip(iyc, 0, H - 1), jnp.clip(ixc, 0, W - 1)]
            return v * jnp.where(valid, w, 0.0)[None]

        return (g(iy0, ix0, wy0 * wx0) + g(iy0, ix1, wy0 * wx1)
                + g(iy1, ix0, wy1 * wx0) + g(iy1, ix1, wy1 * wx1))

    return jax.vmap(sample_one)(x, th)


if __name__ == "__main__":
    key = jax.random.PRNGKey(0)
    kx, kt = jax.random.split(key)

    N, C, H, W = 2, 4, 16, 16
    x = jax.random.normal(kx, (N, C, H, W), dtype=jnp.float32)
    theta = 0.3 * jax.random.normal(kt, (N, 6), dtype=jnp.float32)
    init = jnp.array([[1.0, 0.0, 0.0],
                      [0.0, 1.0, 0.0]], dtype=jnp.float32)  # identity affine
    scale = 0.5

    ref = _affine_ref(x, theta, init, scale)

    # Fast path: bf16 interpolation matrix + bf16 x, single-pass MXU.
    out = affine(x, theta, init, scale)
    jax.block_until_ready(out)
    assert out.shape == (N, C, H, W)
    assert jnp.allclose(out, ref, atol=5e-2, rtol=5e-2), (
        float(jnp.max(jnp.abs(out - ref))))

    # Exact path: f32 M + HIGHEST precision recovers full f32 accuracy.
    out_hi = affine(x, theta, init, scale,
                    precision=jax.lax.Precision.HIGHEST)
    jax.block_until_ready(out_hi)
    assert jnp.allclose(out_hi, ref, atol=1e-4, rtol=1e-4), (
        float(jnp.max(jnp.abs(out_hi - ref))))

    print("KERNEL_OK")
</pallas_src>

<mosaic_0001>
module attributes {stable_mosaic.version = 11 : i64} {
  func.func @_affine_kernel(%arg0: i32, %arg1: i32, %arg2: memref<12xf32, #tpu.memory_space<smem>>, %arg3: memref<8x256xf32, #tpu.memory_space<vmem>>, %arg4: memref<8x128xf32, #tpu.memory_space<vmem>>) attributes {dimension_semantics = [#tpu.dimension_semantics<parallel>, #tpu.dimension_semantics<parallel>], iteration_bounds = array<i64: 1, 2>, scalar_prefetch = 1 : i64, scratch_operands = 0 : i64, tpu.core_type = #tpu.core_type<tc>, window_params = [{transform_indices = @transform_0, window_bounds = array<i64: 8, 256>}, {transform_indices = @transform_1, window_bounds = array<i64: 8, 128>}]} {
    %c128_i32 = arith.constant 128 : i32
    %0 = arith.muli %arg1, %c128_i32 : i32
    %1 = tpu.iota {dimensions = array<i32: 2>} : vector<1x1x128xi32>
    %2 = vector.broadcast %0 : i32 to vector<1x1x128xi32>
    %3 = arith.addi %2, %1 : vector<1x1x128xi32>
    %4 = arith.sitofp %3 : vector<1x1x128xi32> to vector<1x1x128xf32>
    %cst = arith.constant 1.600000e+01 : f32
    %5 = vector.broadcast %cst : f32 to vector<1x1x128xf32>
    %6 = arith.divf %4, %5 : vector<1x1x128xf32>
    %7 = math.floor %6 : vector<1x1x128xf32>
    %cst_0 = arith.constant 1.600000e+01 : f32
    %8 = vector.broadcast %cst_0 : f32 to vector<1x1x128xf32>
    %9 = arith.mulf %7, %8 : vector<1x1x128xf32>
    %10 = arith.subf %4, %9 : vector<1x1x128xf32>
    %cst_1 = arith.constant 2.000000e+00 : f32
    %11 = vector.broadcast %cst_1 : f32 to vector<1x1x128xf32>
    %12 = arith.mulf %11, %7 : vector<1x1x128xf32>
    %cst_2 = arith.constant 1.000000e+00 : f32
    %13 = vector.broadcast %cst_2 : f32 to vector<1x1x128xf32>
    %14 = arith.addf %12, %13 : vector<1x1x128xf32>
    %cst_3 = arith.constant 1.600000e+01 : f32
    %15 = vector.broadcast %cst_3 : f32 to vector<1x1x128xf32>
    %16 = arith.divf %14, %15 : vector<1x1x128xf32>
    %cst_4 = arith.constant 1.000000e+00 : f32
    %17 = vector.broadcast %cst_4 : f32 to vector<1x1x128xf32>
    %18 = arith.subf %16, %17 : vector<1x1x128xf32>
    %cst_5 = arith.constant 2.000000e+00 : f32
    %19 = vector.broadcast %cst_5 : f32 to vector<1x1x128xf32>
    %20 = arith.mulf %19, %10 : vector<1x1x128xf32>
    %cst_6 = arith.constant 1.000000e+00 : f32
    %21 = vector.broadcast %cst_6 : f32 to vector<1x1x128xf32>
    %22 = arith.addf %20, %21 : vector<1x1x128xf32>
    %cst_7 = arith.constant 1.600000e+01 : f32
    %23 = vector.broadcast %cst_7 : f32 to vector<1x1x128xf32>
    %24 = arith.divf %22, %23 : vector<1x1x128xf32>
    %cst_8 = arith.constant 1.000000e+00 : f32
    %25 = vector.broadcast %cst_8 : f32 to vector<1x1x128xf32>
    %26 = arith.subf %24, %25 : vector<1x1x128xf32>
    %27 = tpu.iota {dimensions = array<i32: 0>} : vector<16x1x128xi32>
    %28 = tpu.iota {dimensions = array<i32: 1>} : vector<1x16x128xi32>
    %c0 = arith.constant 0 : index
    %c0_9 = arith.constant 0 : index
    %29 = vector.load %arg3[%c0, %c0_9] : memref<8x256xf32, #tpu.memory_space<vmem>>, vector<8x256xf32>
    %30 = arith.truncf %29 : vector<8x256xf32> to vector<8x256xbf16>
    %c2_i32 = arith.constant 2 : i32
    %31 = arith.muli %arg0, %c2_i32 : i32
    %c0_i32 = arith.constant 0 : i32
    %32 = arith.addi %31, %c0_i32 : i32
    %c6_i32 = arith.constant 6 : i32
    %33 = arith.muli %c6_i32, %32 : i32
    %c0_i32_10 = arith.constant 0 : i32
    %34 = arith.addi %33, %c0_i32_10 : i32
    %35 = arith.index_cast %34 : i32 to index
    %36 = memref.load %arg2[%35] : memref<12xf32, #tpu.memory_space<smem>>
    %c6_i32_11 = arith.constant 6 : i32
    %37 = arith.muli %c6_i32_11, %32 : i32
    %c1_i32 = arith.constant 1 : i32
    %38 = arith.addi %37, %c1_i32 : i32
    %39 = arith.index_cast %38 : i32 to index
    %40 = memref.load %arg2[%39] : memref<12xf32, #tpu.memory_space<smem>>
    %c6_i32_12 = arith.constant 6 : i32
    %41 = arith.muli %c6_i32_12, %32 : i32
    %c2_i32_13 = arith.constant 2 : i32
    %42 = arith.addi %41, %c2_i32_13 : i32
    %43 = arith.index_cast %42 : i32 to index
    %44 = memref.load %arg2[%43] : memref<12xf32, #tpu.memory_space<smem>>
    %c6_i32_14 = arith.constant 6 : i32
    %45 = arith.muli %c6_i32_14, %32 : i32
    %c3_i32 = arith.constant 3 : i32
    %46 = arith.addi %45, %c3_i32 : i32
    %47 = arith.index_cast %46 : i32 to index
    %48 = memref.load %arg2[%47] : memref<12xf32, #tpu.memory_space<smem>>
    %c6_i32_15 = arith.constant 6 : i32
    %49 = arith.muli %c6_i32_15, %32 : i32
    %c4_i32 = arith.constant 4 : i32
    %50 = arith.addi %49, %c4_i32 : i32
    %51 = arith.index_cast %50 : i32 to index
    %52 = memref.load %arg2[%51] : memref<12xf32, #tpu.memory_space<smem>>
    %c6_i32_16 = arith.constant 6 : i32
    %53 = arith.muli %c6_i32_16, %32 : i32
    %c5_i32 = arith.constant 5 : i32
    %54 = arith.addi %53, %c5_i32 : i32
    %55 = arith.index_cast %54 : i32 to index
    %56 = memref.load %arg2[%55] : memref<12xf32, #tpu.memory_space<smem>>
    %57 = vector.broadcast %36 : f32 to vector<1x1x128xf32>
    %58 = arith.mulf %57, %26 : vector<1x1x128xf32>
    %59 = vector.broadcast %40 : f32 to vector<1x1x128xf32>
    %60 = arith.mulf %59, %18 : vector<1x1x128xf32>
    %61 = arith.addf %58, %60 : vector<1x1x128xf32>
    %62 = vector.broadcast %44 : f32 to vector<1x1x128xf32>
    %63 = arith.addf %61, %62 : vector<1x1x128xf32>
    %64 = vector.broadcast %48 : f32 to vector<1x1x128xf32>
    %65 = arith.mulf %64, %26 : vector<1x1x128xf32>
    %66 = vector.broadcast %52 : f32 to vector<1x1x128xf32>
    %67 = arith.mulf %66, %18 : vector<1x1x128xf32>
    %68 = arith.addf %65, %67 : vector<1x1x128xf32>
    %69 = vector.broadcast %56 : f32 to vector<1x1x128xf32>
    %70 = arith.addf %68, %69 : vector<1x1x128xf32>
    %cst_17 = arith.constant 1.000000e+00 : f32
    %71 = vector.broadcast %cst_17 : f32 to vector<1x1x128xf32>
    %72 = arith.addf %63, %71 : vector<1x1x128xf32>
    %cst_18 = arith.constant 1.600000e+01 : f32
    %73 = vector.broadcast %cst_18 : f32 to vector<1x1x128xf32>
    %74 = arith.mulf %72, %73 : vector<1x1x128xf32>
    %cst_19 = arith.constant 1.000000e+00 : f32
    %75 = vector.broadcast %cst_19 : f32 to vector<1x1x128xf32>
    %76 = arith.subf %74, %75 : vector<1x1x128xf32>
    %cst_20 = arith.constant 5.000000e-01 : f32
    %77 = vector.broadcast %cst_20 : f32 to vector<1x1x128xf32>
    %78 = arith.mulf %76, %77 : vector<1x1x128xf32>
    %cst_21 = arith.constant 1.000000e+00 : f32
    %79 = vector.broadcast %cst_21 : f32 to vector<1x1x128xf32>
    %80 = arith.addf %70, %79 : vector<1x1x128xf32>
    %cst_22 = arith.constant 1.600000e+01 : f32
    %81 = vector.broadcast %cst_22 : f32 to vector<1x1x128xf32>
    %82 = arith.mulf %80, %81 : vector<1x1x128xf32>
    %cst_23 = arith.constant 1.000000e+00 : f32
    %83 = vector.broadcast %cst_23 : f32 to vector<1x1x128xf32>
    %84 = arith.subf %82, %83 : vector<1x1x128xf32>
    %cst_24 = arith.constant 5.000000e-01 : f32
    %85 = vector.broadcast %cst_24 : f32 to vector<1x1x128xf32>
    %86 = arith.mulf %84, %85 : vector<1x1x128xf32>
    %87 = math.floor %78 : vector<1x1x128xf32>
    %88 = math.floor %86 : vector<1x1x128xf32>
    %89 = arith.subf %78, %87 : vector<1x1x128xf32>
    %cst_25 = arith.constant 1.000000e+00 : f32
    %90 = vector.broadcast %cst_25 : f32 to vector<1x1x128xf32>
    %91 = arith.subf %90, %89 : vector<1x1x128xf32>
    %92 = arith.subf %86, %88 : vector<1x1x128xf32>
    %cst_26 = arith.constant 1.000000e+00 : f32
    %93 = vector.broadcast %cst_26 : f32 to vector<1x1x128xf32>
    %94 = arith.subf %93, %92 : vector<1x1x128xf32>
    %95 = arith.fptosi %87 : vector<1x1x128xf32> to vector<1x1x128xi32>
    %96 = arith.fptosi %88 : vector<1x1x128xf32> to vector<1x1x128xi32>
    %c1_i32_27 = arith.constant 1 : i32
    %97 = vector.broadcast %c1_i32_27 : i32 to vector<1x1x128xi32>
    %98 = arith.addi %95, %97 : vector<1x1x128xi32>
    %c1_i32_28 = arith.constant 1 : i32
    %99 = vector.broadcast %c1_i32_28 : i32 to vector<1x1x128xi32>
    %100 = arith.addi %96, %99 : vector<1x1x128xi32>
    %101 = vector.broadcast %96 : vector<1x1x128xi32> to vector<16x1x128xi32>
    %102 = arith.cmpi eq, %27, %101 : vector<16x1x128xi32>
    %cst_29 = arith.constant 0.000000e+00 : f32
    %103 = vector.shape_cast %94 : vector<1x1x128xf32> to vector<1x1x128xf32>
    %104 = vector.broadcast %103 : vector<1x1x128xf32> to vector<16x1x128xf32>
    %105 = vector.broadcast %cst_29 : f32 to vector<16x1x128xf32>
    %106 = arith.select %102, %104, %105 : vector<16x1x128xi1>, vector<16x1x128xf32>
    %107 = vector.broadcast %100 : vector<1x1x128xi32> to vector<16x1x128xi32>
    %108 = arith.cmpi eq, %27, %107 : vector<16x1x128xi32>
    %cst_30 = arith.constant 0.000000e+00 : f32
    %109 = vector.shape_cast %92 : vector<1x1x128xf32> to vector<1x1x128xf32>
    %110 = vector.broadcast %109 : vector<1x1x128xf32> to vector<16x1x128xf32>
    %111 = vector.broadcast %cst_30 : f32 to vector<16x1x128xf32>
    %112 = arith.select %108, %110, %111 : vector<16x1x128xi1>, vector<16x1x128xf32>
    %113 = arith.addf %106, %112 : vector<16x1x128xf32>
    %114 = arith.truncf %113 : vector<16x1x128xf32> to vector<16x1x128xbf16>
    %115 = vector.broadcast %95 : vector<1x1x128xi32> to vector<1x16x128xi32>
    %116 = arith.cmpi eq, %28, %115 : vector<1x16x128xi32>
    %cst_31 = arith.constant 0.000000e+00 : f32
    %117 = vector.shape_cast %91 : vector<1x1x128xf32> to vector<1x1x128xf32>
    %118 = vector.broadcast %117 : vector<1x1x128xf32> to vector<1x16x128xf32>
    %119 = vector.broadcast %cst_31 : f32 to vector<1x16x128xf32>
    %120 = arith.select %116, %118, %119 : vector<1x16x128xi1>, vector<1x16x128xf32>
    %121 = vector.broadcast %98 : vector<1x1x128xi32> to vector<1x16x128xi32>
    %122 = arith.cmpi eq, %28, %121 : vector<1x16x128xi32>
    %cst_32 = arith.constant 0.000000e+00 : f32
    %123 = vector.shape_cast %89 : vector<1x1x128xf32> to vector<1x1x128xf32>
    %124 = vector.broadcast %123 : vector<1x1x128xf32> to vector<1x16x128xf32>
    %125 = vector.broadcast %cst_32 : f32 to vector<1x16x128xf32>
    %126 = arith.select %122, %124, %125 : vector<1x16x128xi1>, vector<1x16x128xf32>
    %127 = arith.addf %120, %126 : vector<1x16x128xf32>
    %128 = arith.truncf %127 : vector<1x16x128xf32> to vector<1x16x128xbf16>
    %129 = vector.broadcast %114 : vector<16x1x128xbf16> to vector<16x16x128xbf16>
    %130 = vector.broadcast %128 : vector<1x16x128xbf16> to vector<16x16x128xbf16>
    %131 = arith.mulf %129, %130 : vector<16x16x128xbf16>
    %132 = vector.shape_cast %131 : vector<16x16x128xbf16> to vector<256x128xbf16>
    %133 = vector.extract_strided_slice %30 {offsets = [0, 0], sizes = [4, 256], strides = [1, 1]} : vector<8x256xbf16> to vector<4x256xbf16>
    %cst_33 = arith.constant dense<0.000000e+00> : vector<4x128xf32>
    %134 = tpu.matmul %133, %132, %cst_33 {dimension_numbers = #tpu.dot_dimension_numbers<[1], [0], [0], [1], [0, 0, 1, 1], [], []>} : vector<4x256xbf16>, vector<256x128xbf16>, vector<4x128xf32> -> vector<4x128xf32>
    %c0_34 = arith.constant 0 : index
    %c0_35 = arith.constant 0 : index
    %135 = vector.load %arg4[%c0_34, %c0_35] : memref<8x128xf32, #tpu.memory_space<vmem>>, vector<4x128xf32>
    tpu.vector_store %arg4[%c0_34, %c0_35], %134 {strides = array<i32>} : memref<8x128xf32, #tpu.memory_space<vmem>>, vector<4x128xf32>,
    %c2_i32_36 = arith.constant 2 : i32
    %136 = arith.muli %arg0, %c2_i32_36 : i32
    %c1_i32_37 = arith.constant 1 : i32
    %137 = arith.addi %136, %c1_i32_37 : i32
    %c6_i32_38 = arith.constant 6 : i32
    %138 = arith.muli %c6_i32_38, %137 : i32
    %c0_i32_39 = arith.constant 0 : i32
    %139 = arith.addi %138, %c0_i32_39 : i32
    %140 = arith.index_cast %139 : i32 to index
    %141 = memref.load %arg2[%140] : memref<12xf32, #tpu.memory_space<smem>>
    %c6_i32_40 = arith.constant 6 : i32
    %142 = arith.muli %c6_i32_40, %137 : i32
    %c1_i32_41 = arith.constant 1 : i32
    %143 = arith.addi %142, %c1_i32_41 : i32
    %144 = arith.index_cast %143 : i32 to index
    %145 = memref.load %arg2[%144] : memref<12xf32, #tpu.memory_space<smem>>
    %c6_i32_42 = arith.constant 6 : i32
    %146 = arith.muli %c6_i32_42, %137 : i32
    %c2_i32_43 = arith.constant 2 : i32
    %147 = arith.addi %146, %c2_i32_43 : i32
    %148 = arith.index_cast %147 : i32 to index
    %149 = memref.load %arg2[%148] : memref<12xf32, #tpu.memory_space<smem>>
    %c6_i32_44 = arith.constant 6 : i32
    %150 = arith.muli %c6_i32_44, %137 : i32
    %c3_i32_45 = arith.constant 3 : i32
    %151 = arith.addi %150, %c3_i32_45 : i32
    %152 = arith.index_cast %151 : i32 to index
    %153 = memref.load %arg2[%152] : memref<12xf32, #tpu.memory_space<smem>>
    %c6_i32_46 = arith.constant 6 : i32
    %154 = arith.muli %c6_i32_46, %137 : i32
    %c4_i32_47 = arith.constant 4 : i32
    %155 = arith.addi %154, %c4_i32_47 : i32
    %156 = arith.index_cast %155 : i32 to index
    %157 = memref.load %arg2[%156] : memref<12xf32, #tpu.memory_space<smem>>
    %c6_i32_48 = arith.constant 6 : i32
    %158 = arith.muli %c6_i32_48, %137 : i32
    %c5_i32_49 = arith.constant 5 : i32
    %159 = arith.addi %158, %c5_i32_49 : i32
    %160 = arith.index_cast %159 : i32 to index
    %161 = memref.load %arg2[%160] : memref<12xf32, #tpu.memory_space<smem>>
    %162 = vector.broadcast %141 : f32 to vector<1x1x128xf32>
    %163 = arith.mulf %162, %26 : vector<1x1x128xf32>
    %164 = vector.broadcast %145 : f32 to vector<1x1x128xf32>
    %165 = arith.mulf %164, %18 : vector<1x1x128xf32>
    %166 = arith.addf %163, %165 : vector<1x1x128xf32>
    %167 = vector.broadcast %149 : f32 to vector<1x1x128xf32>
    %168 = arith.addf %166, %167 : vector<1x1x128xf32>
    %169 = vector.broadcast %153 : f32 to vector<1x1x128xf32>
    %170 = arith.mulf %169, %26 : vector<1x1x128xf32>
    %171 = vector.broadcast %157 : f32 to vector<1x1x128xf32>
    %172 = arith.mulf %171, %18 : vector<1x1x128xf32>
    %173 = arith.addf %170, %172 : vector<1x1x128xf32>
    %174 = vector.broadcast %161 : f32 to vector<1x1x128xf32>
    %175 = arith.addf %173, %174 : vector<1x1x128xf32>
    %cst_50 = arith.constant 1.000000e+00 : f32
    %176 = vector.broadcast %cst_50 : f32 to vector<1x1x128xf32>
    %177 = arith.addf %168, %176 : vector<1x1x128xf32>
    %cst_51 = arith.constant 1.600000e+01 : f32
    %178 = vector.broadcast %cst_51 : f32 to vector<1x1x128xf32>
    %179 = arith.mulf %177, %178 : vector<1x1x128xf32>
    %cst_52 = arith.constant 1.000000e+00 : f32
    %180 = vector.broadcast %cst_52 : f32 to vector<1x1x128xf32>
    %181 = arith.subf %179, %180 : vector<1x1x128xf32>
    %cst_53 = arith.constant 5.000000e-01 : f32
    %182 = vector.broadcast %cst_53 : f32 to vector<1x1x128xf32>
    %183 = arith.mulf %181, %182 : vector<1x1x128xf32>
    %cst_54 = arith.constant 1.000000e+00 : f32
    %184 = vector.broadcast %cst_54 : f32 to vector<1x1x128xf32>
    %185 = arith.addf %175, %184 : vector<1x1x128xf32>
    %cst_55 = arith.constant 1.600000e+01 : f32
    %186 = vector.broadcast %cst_55 : f32 to vector<1x1x128xf32>
    %187 = arith.mulf %185, %186 : vector<1x1x128xf32>
    %cst_56 = arith.constant 1.000000e+00 : f32
    %188 = vector.broadcast %cst_56 : f32 to vector<1x1x128xf32>
    %189 = arith.subf %187, %188 : vector<1x1x128xf32>
    %cst_57 = arith.constant 5.000000e-01 : f32
    %190 = vector.broadcast %cst_57 : f32 to vector<1x1x128xf32>
    %191 = arith.mulf %189, %190 : vector<1x1x128xf32>
    %192 = math.floor %183 : vector<1x1x128xf32>
    %193 = math.floor %191 : vector<1x1x128xf32>
    %194 = arith.subf %183, %192 : vector<1x1x128xf32>
    %cst_58 = arith.constant 1.000000e+00 : f32
    %195 = vector.broadcast %cst_58 : f32 to vector<1x1x128xf32>
    %196 = arith.subf %195, %194 : vector<1x1x128xf32>
    %197 = arith.subf %191, %193 : vector<1x1x128xf32>
    %cst_59 = arith.constant 1.000000e+00 : f32
    %198 = vector.broadcast %cst_59 : f32 to vector<1x1x128xf32>
    %199 = arith.subf %198, %197 : vector<1x1x128xf32>
    %200 = arith.fptosi %192 : vector<1x1x128xf32> to vector<1x1x128xi32>
    %201 = arith.fptosi %193 : vector<1x1x128xf32> to vector<1x1x128xi32>
    %c1_i32_60 = arith.constant 1 : i32
    %202 = vector.broadcast %c1_i32_60 : i32 to vector<1x1x128xi32>
    %203 = arith.addi %200, %202 : vector<1x1x128xi32>
    %c1_i32_61 = arith.constant 1 : i32
    %204 = vector.broadcast %c1_i32_61 : i32 to vector<1x1x128xi32>
    %205 = arith.addi %201, %204 : vector<1x1x128xi32>
    %206 = vector.broadcast %201 : vector<1x1x128xi32> to vector<16x1x128xi32>
    %207 = arith.cmpi eq, %27, %206 : vector<16x1x128xi32>
    %cst_62 = arith.constant 0.000000e+00 : f32
    %208 = vector.shape_cast %199 : vector<1x1x128xf32> to vector<1x1x128xf32>
    %209 = vector.broadcast %208 : vector<1x1x128xf32> to vector<16x1x128xf32>
    %210 = vector.broadcast %cst_62 : f32 to vector<16x1x128xf32>
    %211 = arith.select %207, %209, %210 : vector<16x1x128xi1>, vector<16x1x128xf32>
    %212 = vector.broadcast %205 : vector<1x1x128xi32> to vector<16x1x128xi32>
    %213 = arith.cmpi eq, %27, %212 : vector<16x1x128xi32>
    %cst_63 = arith.constant 0.000000e+00 : f32
    %214 = vector.shape_cast %197 : vector<1x1x128xf32> to vector<1x1x128xf32>
    %215 = vector.broadcast %214 : vector<1x1x128xf32> to vector<16x1x128xf32>
    %216 = vector.broadcast %cst_63 : f32 to vector<16x1x128xf32>
    %217 = arith.select %213, %215, %216 : vector<16x1x128xi1>, vector<16x1x128xf32>
    %218 = arith.addf %211, %217 : vector<16x1x128xf32>
    %219 = arith.truncf %218 : vector<16x1x128xf32> to vector<16x1x128xbf16>
    %220 = vector.broadcast %200 : vector<1x1x128xi32> to vector<1x16x128xi32>
    %221 = arith.cmpi eq, %28, %220 : vector<1x16x128xi32>
    %cst_64 = arith.constant 0.000000e+00 : f32
    %222 = vector.shape_cast %196 : vector<1x1x128xf32> to vector<1x1x128xf32>
    %223 = vector.broadcast %222 : vector<1x1x128xf32> to vector<1x16x128xf32>
    %224 = vector.broadcast %cst_64 : f32 to vector<1x16x128xf32>
    %225 = arith.select %221, %223, %224 : vector<1x16x128xi1>, vector<1x16x128xf32>
    %226 = vector.broadcast %203 : vector<1x1x128xi32> to vector<1x16x128xi32>
    %227 = arith.cmpi eq, %28, %226 : vector<1x16x128xi32>
    %cst_65 = arith.constant 0.000000e+00 : f32
    %228 = vector.shape_cast %194 : vector<1x1x128xf32> to vector<1x1x128xf32>
    %229 = vector.broadcast %228 : vector<1x1x128xf32> to vector<1x16x128xf32>
    %230 = vector.broadcast %cst_65 : f32 to vector<1x16x128xf32>
    %231 = arith.select %227, %229, %230 : vector<1x16x128xi1>, vector<1x16x128xf32>
    %232 = arith.addf %225, %231 : vector<1x16x128xf32>
    %233 = arith.truncf %232 : vector<1x16x128xf32> to vector<1x16x128xbf16>
    %234 = vector.broadcast %219 : vector<16x1x128xbf16> to vector<16x16x128xbf16>
    %235 = vector.broadcast %233 : vector<1x16x128xbf16> to vector<16x16x128xbf16>
    %236 = arith.mulf %234, %235 : vector<16x16x128xbf16>
    %237 = vector.shape_cast %236 : vector<16x16x128xbf16> to vector<256x128xbf16>
    %238 = vector.extract_strided_slice %30 {offsets = [4, 0], sizes = [4, 256], strides = [1, 1]} : vector<8x256xbf16> to vector<4x256xbf16>
    %cst_66 = arith.constant dense<0.000000e+00> : vector<4x128xf32>
    %239 = tpu.matmul %238, %237, %cst_66 {dimension_numbers = #tpu.dot_dimension_numbers<[1], [0], [0], [1], [0, 0, 1, 1], [], []>} : vector<4x256xbf16>, vector<256x128xbf16>, vector<4x128xf32> -> vector<4x128xf32>
    %c4 = arith.constant 4 : index
    %c0_67 = arith.constant 0 : index
    %240 = vector.load %arg4[%c4, %c0_67] : memref<8x128xf32, #tpu.memory_space<vmem>>, vector<4x128xf32>
    tpu.vector_store %arg4[%c4, %c0_67], %239 {strides = array<i32>} : memref<8x128xf32, #tpu.memory_space<vmem>>, vector<4x128xf32>,
    return
  }
  func.func @transform_0(%arg0: i32, %arg1: i32, %arg2: memref<12xf32, #tpu.memory_space<smem>>) -> (i32, i32) {
    %c0_i32 = arith.constant 0 : i32
    %c0_i32_0 = arith.constant 0 : i32
    return %arg0, %c0_i32 : i32, i32
  }
  func.func @transform_1(%arg0: i32, %arg1: i32, %arg2: memref<12xf32, #tpu.memory_space<smem>>) -> (i32, i32) {
    %c0_i32 = arith.constant 0 : i32
    return %arg0, %arg1 : i32, i32
  }
}

</mosaic_0001>

<llo_original>
// kernel: tpu_custom_call.1
$region0: #{tpu_custom_call.1}
  #allocation0 [shape = 'u32[]', space=smem, size = 0x4, offset = 0x4, fixed_abs, tag = 'smem constant byte address 0x4 - core index']
  #allocation1 [shape = 'u32[72,128]{1,0:T(1,128)}', space=vmem, size = 0x9000, scoped, tag = 'internal scratch']
  #allocation2 [shape = 's32[1]{0}', space=sflag, size = 0x4, scoped, tag = 'scoped memory for tpu_custom_call.1']
  #allocation3 [shape = 'u8[512]{0}', space=smem, size = 0x200, scoped, tag = 'prefetched SMEM operand 0']
  %s0 = inlined_call_operand.hbm [shape: f32[12], index: 0, kind: input, shape index: {}]
  %s1 = inlined_call_operand.hbm [shape: f32[8,256], index: 1, kind: input, shape index: {}]
  %s2 = inlined_call_operand.hbm [shape: f32[8,256], index: 2, kind: output, shape index: {}]
  %s3 = sld [smem:[#allocation0]]
  $region41: #{tpu_custom_call.1} parent=0
    _
  %s5 = ssub.s32 1, %s3
  %s6 = scalar_select 0, %s5, %s3
  %s8 = sshll.u32 %s0, 4
  %s9 = int_to_ptr.hbm [resolvable:$true] %s8
  %11 = dma.hbm_to_smem %s9, 16, [#allocation3], [#allocation2]
  %13 = dma.done [#allocation2], 16
  %14 = sfence
  $region1: #{tpu_custom_call.1} parent=0
    #allocation4 [shape = 'u8[8192]{0}', space=vmem, size = 0x2000, scoped, tag = 'input window, operand 1, single buffered']
    #allocation5 [shape = 's32[2]{0}', space=sflag, size = 0x8, scoped, tag = 'scoped memory for tpu_custom_call.1']
    #allocation6 [shape = 's32[2]{0}', space=sflag, size = 0x8, scoped, tag = 'scoped memory for tpu_custom_call.1']
    #allocation7 [shape = 'u8[8192]{0}', space=vmem, size = 0x2000, scoped, tag = 'output window, operand 0']
    %15 = vsyncpa [#allocation5], 0
    %16 = vsyncpa [#allocation6], 0
    %s17 = scalar_lea.sflag [#allocation6], 1
    %18 = vsyncpa %s17, 0
    loop: start=0, step=1, limit=4
    $region2: #{tpu_custom_call.1} parent=1 // loop_pre_header
      _
    $region3: #{tpu_custom_call.1} parent=1 // loop_header
      %s20 = sphi 0, %s24
      %p21 = scmp.ge.s32.totalorder %s20, 4
      %s27 = sphi 0, %s39
      %s28 = sphi 0, %s35
      %s29 = sphi 0, %s27
      %s30 = sphi 0, %s28
      %s31 = sphi 0, %s29
      %s32 = sphi 0, %s30
      %s42 = sphi 0, %s44
      %s45 = sphi 0, %s42
      %s46 = sphi 0, %s45
      %s62 = sphi 0, %s46
      %s70 = sphi 0, %s72
      %s73 = sphi 0, %s70
      %s74 = sphi 0, %s73
      %s90 = sphi 0, %s74
    $region4: #{tpu_custom_call.1} parent=1 // loop_header_branch
      %23 = sbr.rel (%p21) target = $region8
    $region5: #{tpu_custom_call.1} parent=1 // loop_body
      %s25 = ssub.s32 %s20, 1
      %s26 = ssub.s32 %s20, 2
      %s33 = sadd.s32 1, %s28
      %p34 = scmp.ge.s32.totalorder %s33, 2
      %s35 = scalar_select %p34, 0, %s33
      %s36 = sadd.s32 1, %s27
      %s37 = scalar_select %p34, %s36, %s27
      %p38 = scmp.ge.s32.totalorder %s37, 1
      %s39 = scalar_select %p38, 0, %s37
      %s40 = ssub.s32 %s27, %s39
      %p41 = scmp.eq.s32.totalorder %s40, 0
      %s43 = sadd.s32 %s42, 1
      %s44 = scalar_select %p41, %s42, %s43
      %p47 = pneg %p41
      %p48 = scmp.eq.s32.totalorder %s20, 1
      %p49 = por %p47, %p48
      %p50 = scmp.ne.s32.totalorder %s42, %s45
      %p51 = scmp.eq.s32.totalorder %s20, 0
      %p52 = por %p50, %p51
      %p53 = scmp.ne.s32.totalorder %s42, %s45
      %p54 = scmp.eq.s32.totalorder %s25, 1
      %p55 = por %p53, %p54
      %p56 = scmp.ne.s32.totalorder %s45, %s46
      %p57 = scmp.eq.s32.totalorder %s25, 0
      %p58 = por %p56, %p57
      %p59 = scmp.ne.s32.totalorder %s45, %s46
      %p60 = scmp.eq.s32.totalorder %s26, 1
      %p61 = por %p59, %p60
      %p63 = scmp.ne.s32.totalorder %s46, %s62
      %p64 = scmp.eq.s32.totalorder %s26, 0
      %p65 = por %p63, %p64
      %s66 = ssub.s32 %s27, %s39
      %s67 = ssub.s32 %s28, %s35
      %s68 = sor.u32 %s66, %s67
      %p69 = scmp.eq.s32.totalorder %s68, 0
      %s71 = sadd.s32 %s70, 1
      %s72 = scalar_select %p69, %s70, %s71
      %p75 = pneg %p69
      %p76 = scmp.eq.s32.totalorder %s20, 1
      %p77 = por %p75, %p76
      %p78 = scmp.ne.s32.totalorder %s70, %s73
      %p79 = scmp.eq.s32.totalorder %s20, 0
      %p80 = por %p78, %p79
      %p81 = scmp.ne.s32.totalorder %s70, %s73
      %p82 = scmp.eq.s32.totalorder %s25, 1
      %p83 = por %p81, %p82
      %p84 = scmp.ne.s32.totalorder %s73, %s74
      %p85 = scmp.eq.s32.totalorder %s25, 0
      %p86 = por %p84, %p85
      %p87 = scmp.ne.s32.totalorder %s73, %s74
      %p88 = scmp.eq.s32.totalorder %s26, 1
      %p89 = por %p87, %p88
      %p91 = scmp.ne.s32.totalorder %s74, %s90
      %p92 = scmp.eq.s32.totalorder %s26, 0
      %p93 = por %p91, %p92
      %p94 = scmp.le.s32.totalorder 1, %s20
      %p95 = scmp.lt.s32.totalorder %s20, 3
      %p96 = pnand %p94, %p95
      %p97 = pneg %p96
      // Predicated region
      $region9: #{tpu_custom_call.1} parent=5 // pred_check
        _
      $region10: #{tpu_custom_call.1} parent=5 // pred_check_branch
        %99 = sbr.rel (%p96) target = $region12
      $region11: #{tpu_custom_call.1} parent=5 // pred_region
        %s100 = ssub.s32 %s20, 1
        // Predicated region
        $region13: #{tpu_custom_call.1} parent=11 // pred_check
          %p101 = pneg %p58
        $region14: #{tpu_custom_call.1} parent=11 // pred_check_branch
          %103 = sbr.rel (%p101) target = $region16
        $region15: #{tpu_custom_call.1} parent=11 // pred_region
          %105 = vsyncadd [#allocation5], 0
          %s106 = smul.addr %s29, 2
          %s107 = smul.addr %s106, 8
          %s108 = scalar_lea.hbm %s1, %s107
          %s110 = sshll.u32 %s108, 4
          %s111 = int_to_ptr.hbm [resolvable:$true] %s110
          %s112 = sshll.u32 [#allocation4], 4
          %s113 = int_to_ptr.vmem [resolvable:$true] %s112
          %115 = dma.hbm_to_vmem [thread:$0]  %s111, 256, %s113, [#allocation5]
        $region16: #{tpu_custom_call.1} parent=11 // pred_fallthru
          _
      $region12: #{tpu_custom_call.1} parent=5 // pred_fallthru
        _
      %p116 = scmp.lt.s32.totalorder %s20, 2
      // Predicated region
      $region17: #{tpu_custom_call.1} parent=5 // pred_check
        %p117 = pneg %p116
      $region18: #{tpu_custom_call.1} parent=5 // pred_check_branch
        %119 = sbr.rel (%p117) target = $region20
      $region19: #{tpu_custom_call.1} parent=5 // pred_region
        _
      $region20: #{tpu_custom_call.1} parent=5 // pred_fallthru
        _
      %p120 = scmp.le.s32.totalorder 1, %s20
      %p121 = scmp.lt.s32.totalorder %s20, 3
      %p122 = pnand %p120, %p121
      %p123 = pneg %p122
      // Predicated region
      $region21: #{tpu_custom_call.1} parent=5 // pred_check
        _
      $region22: #{tpu_custom_call.1} parent=5 // pred_check_branch
        %125 = sbr.rel (%p122) target = $region24
      $region23: #{tpu_custom_call.1} parent=5 // pred_region
        %s126 = ssub.s32 %s20, 1
        // Predicated region
        $region25: #{tpu_custom_call.1} parent=23 // pred_check
          %p127 = pneg %p58
        $region26: #{tpu_custom_call.1} parent=23 // pred_check_branch
          %129 = sbr.rel (%p127) target = $region28
        $region27: #{tpu_custom_call.1} parent=23 // pred_region
          %131 = dma.done [#allocation5], 256
        $region28: #{tpu_custom_call.1} parent=23 // pred_fallthru
          _
        %p132 = pneg %p58
        %p133 = pneg %p55
        %p134 = pneg %p86
        %p135 = pneg %p83
        %s136 = sand.u32 %s73, 1
        %s137 = scalar_lea.sflag [#allocation6], %s136
        %s138 = sand.u32 %s73, 1
        %s139 = smul.addr %s138, 8
        %s140 = scalar_lea.vmem [#allocation7], %s139
        %s141 = smul.u32 %s30, 128
        %v142 = vlaneseq
        %v143 = vand.u32 %v142, 127
        %v144 = vstv %s141
        %v145 = vadd.s32 %v144, %v143
        %v146 = vcvt.s32.f32 %v145
        %v147 = vrcp.pop 16.0
        %v148 = vmul.f32 16.0, %v147
        %v149 = vsub.f32 1.0, %v148
        %v150 = vmul.f32 %v147, %v149
        %v151 = vadd.f32 %v147, %v150
        %vm152 = vweird.f32 %v147
        %v153 = vsel %vm152, %v147, %v151
        %v154 = vmul.f32 %v146, %v153
        %v155 = vfloor.f32 %v154
        %v156 = vmul.f32 %v155, 16.0
        %v157 = vsub.f32 %v146, %v156
        %v158 = vmul.f32 %v155, 2.0
        %v159 = vadd.f32 %v158, 1.0
        %v160 = vmul.f32 %v159, %v153
        %v161 = vsub.f32 %v160, 1.0
        %v162 = vmul.f32 %v157, 2.0
        %v163 = vadd.f32 %v162, 1.0
        %v164 = vmul.f32 %v163, %v153
        %v165 = vsub.f32 %v164, 1.0
        %v166 = vlaneseq
        %v167 = vshrl.u32 %v166, 7
        %v168 = vadd.s32 %v167, 8
        %v169 = vld [vmem:[#allocation4] sm:$0xff]
        %v170 = vld [vmem:[#allocation4 + $0x8] sm:$0xff]
        %v171 = vpack.c.bf16 %v170, %v169
        %s172 = smul.u32 %s29, 12
        %s173 = sld [smem:[#allocation3 + %s172]]
        %s174 = sadd.s32 %s172, 1
        %s175 = sld [smem:[#allocation3 + %s174]]
        %s176 = sadd.s32 %s172, 2
        %s177 = sld [smem:[#allocation3 + %s176]]
        %s178 = sadd.s32 %s172, 3
        %s179 = sld [smem:[#allocation3 + %s178]]
        %s180 = sadd.s32 %s172, 4
        %s181 = sld [smem:[#allocation3 + %s180]]
        %s182 = sadd.s32 %s172, 5
        %s183 = sld [smem:[#allocation3 + %s182]]
        %v184 = vstv %s173
        %v185 = vmul.f32 %v184, %v165
        %v186 = vstv %s175
        %v187 = vmul.f32 %v186, %v161
        %v188 = vadd.f32 %v185, %v187
        %v189 = vstv %s177
        %v190 = vadd.f32 %v188, %v189
        %v191 = vstv %s179
        %v192 = vmul.f32 %v191, %v165
        %v193 = vstv %s181
        %v194 = vmul.f32 %v193, %v161
        %v195 = vadd.f32 %v192, %v194
        %v196 = vstv %s183
        %v197 = vadd.f32 %v195, %v196
        %v198 = vadd.f32 %v190, 1.0
        %v199 = vmul.f32 %v198, 16.0
        %v200 = vsub.f32 %v199, 1.0
        %v201 = vmul.f32 %v200, 0.5
        %v202 = vadd.f32 %v197, 1.0
        %v203 = vmul.f32 %v202, 16.0
        %v204 = vsub.f32 %v203, 1.0
        %v205 = vmul.f32 %v204, 0.5
        %v206 = vfloor.f32 %v201
        %v207 = vfloor.f32 %v205
        %v208 = vsub.f32 %v201, %v206
        %v209 = vsub.f32 1.0, %v208
        %v210 = vsub.f32 %v205, %v207
        %v211 = vsub.f32 1.0, %v210
        %v212 = vcvt.f32.s32.to.zero.pseudo %v206
        %v213 = vcvt.f32.s32.to.zero.pseudo %v207
        %v214 = vadd.s32 %v212, 1
        %v215 = vadd.s32 %v213, 1
        %vm216 = vcmp.eq.s32.totalorder %v213, 0
        %vm217 = vcmp.eq.s32.totalorder %v213, 1
        %vm218 = vcmp.eq.s32.totalorder %v213, 2
        %vm219 = vcmp.eq.s32.totalorder %v213, 3
        %vm220 = vcmp.eq.s32.totalorder %v213, 4
        %vm221 = vcmp.eq.s32.totalorder %v213, 5
        %vm222 = vcmp.eq.s32.totalorder %v213, 6
        %vm223 = vcmp.eq.s32.totalorder %v213, 7
        %vm224 = vcmp.eq.s32.totalorder %v213, 8
        %vm225 = vcmp.eq.s32.totalorder %v213, 9
        %vm226 = vcmp.eq.s32.totalorder %v213, 10
        %vm227 = vcmp.eq.s32.totalorder %v213, 11
        %vm228 = vcmp.eq.s32.totalorder %v213, 12
        %vm229 = vcmp.eq.s32.totalorder %v213, 13
        %vm230 = vcmp.eq.s32.totalorder %v213, 14
        %vm231 = vcmp.eq.s32.totalorder %v213, 15
        %v232 = vsel %vm216, %v211, 0.0
        %v233 = vsel %vm217, %v211, 0.0
        %v234 = vsel %vm218, %v211, 0.0
        %v235 = vsel %vm219, %v211, 0.0
        %v236 = vsel %vm220, %v211, 0.0
        %v237 = vsel %vm221, %v211, 0.0
        %v238 = vsel %vm222, %v211, 0.0
        %v239 = vsel %vm223, %v211, 0.0
        %v240 = vsel %vm224, %v211, 0.0
        %v241 = vsel %vm225, %v211, 0.0
        %v242 = vsel %vm226, %v211, 0.0
        %v243 = vsel %vm227, %v211, 0.0
        %v244 = vsel %vm228, %v211, 0.0
        %v245 = vsel %vm229, %v211, 0.0
        %v246 = vsel %vm230, %v211, 0.0
        %v247 = vsel %vm231, %v211, 0.0
        %vm248 = vcmp.eq.s32.totalorder %v215, 0
        %vm249 = vcmp.eq.s32.totalorder %v215, 1
        %vm250 = vcmp.eq.s32.totalorder %v215, 2
        %vm251 = vcmp.eq.s32.totalorder %v215, 3
        %vm252 = vcmp.eq.s32.totalorder %v215, 4
        %vm253 = vcmp.eq.s32.totalorder %v215, 5
        %vm254 = vcmp.eq.s32.totalorder %v215, 6
        %vm255 = vcmp.eq.s32.totalorder %v215, 7
        %vm256 = vcmp.eq.s32.totalorder %v215, 8
        %vm257 = vcmp.eq.s32.totalorder %v215, 9
        %vm258 = vcmp.eq.s32.totalorder %v215, 10
        %vm259 = vcmp.eq.s32.totalorder %v215, 11
        %vm260 = vcmp.eq.s32.totalorder %v215, 12
        %vm261 = vcmp.eq.s32.totalorder %v215, 13
        %vm262 = vcmp.eq.s32.totalorder %v215, 14
        %vm263 = vcmp.eq.s32.totalorder %v215, 15
        %v264 = vsel %vm248, %v210, 0.0
        %v265 = vsel %vm249, %v210, 0.0
        %v266 = vsel %vm250, %v210, 0.0
        %v267 = vsel %vm251, %v210, 0.0
        %v268 = vsel %vm252, %v210, 0.0
        %v269 = vsel %vm253, %v210, 0.0
        %v270 = vsel %vm254, %v210, 0.0
        %v271 = vsel %vm255, %v210, 0.0
        %v272 = vsel %vm256, %v210, 0.0
        %v273 = vsel %vm257, %v210, 0.0
        %v274 = vsel %vm258, %v210, 0.0
        %v275 = vsel %vm259, %v210, 0.0
        %v276 = vsel %vm260, %v210, 0.0
        %v277 = vsel %vm261, %v210, 0.0
        %v278 = vsel %vm262, %v210, 0.0
        %v279 = vsel %vm263, %v210, 0.0
        %v280 = vadd.f32 %v232, %v264
        %v281 = vadd.f32 %v233, %v265
        %v282 = vadd.f32 %v234, %v266
        %v283 = vadd.f32 %v235, %v267
        %v284 = vadd.f32 %v236, %v268
        %v285 = vadd.f32 %v237, %v269
        %v286 = vadd.f32 %v238, %v270
        %v287 = vadd.f32 %v239, %v271
        %v288 = vadd.f32 %v240, %v272
        %v289 = vadd.f32 %v241, %v273
        %v290 = vadd.f32 %v242, %v274
        %v291 = vadd.f32 %v243, %v275
        %v292 = vadd.f32 %v244, %v276
        %v293 = vadd.f32 %v245, %v277
        %v294 = vadd.f32 %v246, %v278
        %v295 = vadd.f32 %v247, %v279
        %v296 = vpack.c.bf16 %v280, %v280
        %v297 = vpack.c.bf16 %v281, %v281
        %v298 = vpack.c.bf16 %v282, %v282
        %v299 = vpack.c.bf16 %v283, %v283
        %v300 = vpack.c.bf16 %v284, %v284
        %v301 = vpack.c.bf16 %v285, %v285
        %v302 = vpack.c.bf16 %v286, %v286
        %v303 = vpack.c.bf16 %v287, %v287
        %v304 = vpack.c.bf16 %v288, %v288
        %v305 = vpack.c.bf16 %v289, %v289
        %v306 = vpack.c.bf16 %v290, %v290
        %v307 = vpack.c.bf16 %v291, %v291
        %v308 = vpack.c.bf16 %v292, %v292
        %v309 = vpack.c.bf16 %v293, %v293
        %v310 = vpack.c.bf16 %v294, %v294
        %v311 = vpack.c.bf16 %v295, %v295
        %vm312 = vcmp.eq.s32.totalorder %v167, %v212
        %vm313 = vcmp.eq.s32.totalorder %v168, %v212
        %v314 = vsel %vm312, %v209, 0.0
        %v315 = vsel %vm313, %v209, 0.0
        %vm316 = vcmp.eq.s32.totalorder %v167, %v214
        %vm317 = vcmp.eq.s32.totalorder %v168, %v214
        %v318 = vsel %vm316, %v208, 0.0
        %v319 = vsel %vm317, %v208, 0.0
        %v320 = vadd.f32 %v314, %v318
        %v321 = vadd.f32 %v315, %v319
        %v322 = vpack.c.bf16 %v320, %v320
        %v323 = vpack.c.bf16 %v321, %v321
        %v324 = vunpack.c.l.bf16 %v296
        %v325 = vunpack.c.l.bf16 %v297
        %v326 = vunpack.c.l.bf16 %v298
        %v327 = vunpack.c.l.bf16 %v299
        %v328 = vunpack.c.l.bf16 %v300
        %v329 = vunpack.c.l.bf16 %v301
        %v330 = vunpack.c.l.bf16 %v302
        %v331 = vunpack.c.l.bf16 %v303
        %v332 = vunpack.c.l.bf16 %v304
        %v333 = vunpack.c.l.bf16 %v305
        %v334 = vunpack.c.l.bf16 %v306
        %v335 = vunpack.c.l.bf16 %v307
        %v336 = vunpack.c.l.bf16 %v308
        %v337 = vunpack.c.l.bf16 %v309
        %v338 = vunpack.c.l.bf16 %v310
        %v339 = vunpack.c.l.bf16 %v311
        %v340 = vunpack.c.l.bf16 %v322
        %v341 = vunpack.c.l.bf16 %v323
        %v342 = vmul.f32 %v324, %v340
        %v343 = vmul.f32 %v324, %v341
        %v344 = vmul.f32 %v325, %v340
        %v345 = vmul.f32 %v325, %v341
        %v346 = vmul.f32 %v326, %v340
        %v347 = vmul.f32 %v326, %v341
        %v348 = vmul.f32 %v327, %v340
        %v349 = vmul.f32 %v327, %v341
        %v350 = vmul.f32 %v328, %v340
        %v351 = vmul.f32 %v328, %v341
        %v352 = vmul.f32 %v329, %v340
        %v353 = vmul.f32 %v329, %v341
        %v354 = vmul.f32 %v330, %v340
        %v355 = vmul.f32 %v330, %v341
        %v356 = vmul.f32 %v331, %v340
        %v357 = vmul.f32 %v331, %v341
        %v358 = vmul.f32 %v332, %v340
        %v359 = vmul.f32 %v332, %v341
        %v360 = vmul.f32 %v333, %v340
        %v361 = vmul.f32 %v333, %v341
        %v362 = vmul.f32 %v334, %v340
        %v363 = vmul.f32 %v334, %v341
        %v364 = vmul.f32 %v335, %v340
        %v365 = vmul.f32 %v335, %v341
        %v366 = vmul.f32 %v336, %v340
        %v367 = vmul.f32 %v336, %v341
        %v368 = vmul.f32 %v337, %v340
        %v369 = vmul.f32 %v337, %v341
        %v370 = vmul.f32 %v338, %v340
        %v371 = vmul.f32 %v338, %v341
        %v372 = vmul.f32 %v339, %v340
        %v373 = vmul.f32 %v339, %v341
        %v374 = vpack.c.bf16 %v342, %v342
        %v375 = vpack.c.bf16 %v343, %v343
        %v376 = vpack.c.bf16 %v344, %v344
        %v377 = vpack.c.bf16 %v345, %v345
        %v378 = vpack.c.bf16 %v346, %v346
        %v379 = vpack.c.bf16 %v347, %v347
        %v380 = vpack.c.bf16 %v348, %v348
        %v381 = vpack.c.bf16 %v349, %v349
        %v382 = vpack.c.bf16 %v350, %v350
        %v383 = vpack.c.bf16 %v351, %v351
        %v384 = vpack.c.bf16 %v352, %v352
        %v385 = vpack.c.bf16 %v353, %v353
        %v386 = vpack.c.bf16 %v354, %v354
        %v387 = vpack.c.bf16 %v355, %v355
        %v388 = vpack.c.bf16 %v356, %v356
        %v389 = vpack.c.bf16 %v357, %v357
        %v390 = vpack.c.bf16 %v358, %v358
        %v391 = vpack.c.bf16 %v359, %v359
        %v392 = vpack.c.bf16 %v360, %v360
        %v393 = vpack.c.bf16 %v361, %v361
        %v394 = vpack.c.bf16 %v362, %v362
        %v395 = vpack.c.bf16 %v363, %v363
        %v396 = vpack.c.bf16 %v364, %v364
        %v397 = vpack.c.bf16 %v365, %v365
        %v398 = vpack.c.bf16 %v366, %v366
        %v399 = vpack.c.bf16 %v367, %v367
        %v400 = vpack.c.bf16 %v368, %v368
        %v401 = vpack.c.bf16 %v369, %v369
        %v402 = vpack.c.bf16 %v370, %v370
        %v403 = vpack.c.bf16 %v371, %v371
        %v404 = vpack.c.bf16 %v372, %v372
        %v405 = vpack.c.bf16 %v373, %v373
        %v407 = vunpack.c.l.b16 %v171
        %v408 = vunpack.c.h.b16 %v171
        %v409 = vpack.c.b16 %v407, %v407
        %v410 = vpack.c.b16 %v408, %v408
        %v445 = vunpack.c.l.b16 %v374
        %v446 = vunpack.c.l.b16 %v375
        %v447 = vunpack.c.l.b16 %v376
        %v448 = vunpack.c.l.b16 %v377
        %v449 = vunpack.c.l.b16 %v378
        %v450 = vunpack.c.l.b16 %v379
        %v451 = vunpack.c.l.b16 %v380
        %v452 = vunpack.c.l.b16 %v381
        %v453 = vunpack.c.l.b16 %v382
        %v454 = vunpack.c.l.b16 %v383
        %v455 = vunpack.c.l.b16 %v384
        %v456 = vunpack.c.l.b16 %v385
        %v457 = vunpack.c.l.b16 %v386
        %v458 = vunpack.c.l.b16 %v387
        %v459 = vunpack.c.l.b16 %v388
        %v460 = vunpack.c.l.b16 %v389
        %v461 = vunpack.c.l.b16 %v390
        %v462 = vunpack.c.l.b16 %v391
        %v463 = vunpack.c.l.b16 %v392
        %v464 = vunpack.c.l.b16 %v393
        %v465 = vunpack.c.l.b16 %v394
        %v466 = vunpack.c.l.b16 %v395
        %v467 = vunpack.c.l.b16 %v396
        %v468 = vunpack.c.l.b16 %v397
        %v469 = vunpack.c.l.b16 %v398
        %v470 = vunpack.c.l.b16 %v399
        %v471 = vunpack.c.l.b16 %v400
        %v472 = vunpack.c.l.b16 %v401
        %v473 = vunpack.c.l.b16 %v402
        %v474 = vunpack.c.l.b16 %v403
        %v475 = vunpack.c.l.b16 %v404
        %v476 = vunpack.c.l.b16 %v405
        %v477 = vpack.c.b16 %v446, %v445
        %v478 = vpack.c.b16 %v448, %v447
        %v479 = vpack.c.b16 %v450, %v449
        %v480 = vpack.c.b16 %v452, %v451
        %v481 = vpack.c.b16 %v454, %v453
        %v482 = vpack.c.b16 %v456, %v455
        %v483 = vpack.c.b16 %v458, %v457
        %v484 = vpack.c.b16 %v460, %v459
        %v485 = vpack.c.b16 %v462, %v461
        %v486 = vpack.c.b16 %v464, %v463
        %v487 = vpack.c.b16 %v466, %v465
        %v488 = vpack.c.b16 %v468, %v467
        %v489 = vpack.c.b16 %v470, %v469
        %v490 = vpack.c.b16 %v472, %v471
        %v491 = vpack.c.b16 %v474, %v473
        %v492 = vpack.c.b16 %v476, %v475
        %509 = vmatpush.bf16.msra.mxu0 %v484
        %510 = vmatpush.bf16.msra.mxu0 %v483
        %511 = vmatpush.bf16.msra.mxu0 %v482
        %512 = vmatpush.bf16.msra.mxu0 %v481
        %513 = vmatpush.bf16.msra.mxu0 %v480
        %514 = vmatpush.bf16.msra.mxu0 %v479
        %515 = vmatpush.bf16.msra.mxu0 %v478
        %516 = vmatpush.bf16.msra.mxu0 %v477
        %517 = vmatmul.bf16.gmra.mxu0 %v409
        %v518 = vpop.f32.mrf.mxu0
        %v519 = vadd.f32 0.0, %v518
        %v520 = vpop.f32.mrf.mxu0
        %521 = vdwg.mxu0
        %522 = vmatpush.bf16.msra.mxu0 %v492
        %523 = vmatpush.bf16.msra.mxu0 %v491
        %524 = vmatpush.bf16.msra.mxu0 %v490
        %525 = vmatpush.bf16.msra.mxu0 %v489
        %526 = vmatpush.bf16.msra.mxu0 %v488
        %527 = vmatpush.bf16.msra.mxu0 %v487
        %528 = vmatpush.bf16.msra.mxu0 %v486
        %529 = vmatpush.bf16.msra.mxu0 %v485
        %530 = vmatmul.bf16.gmra.mxu0 %v410
        %v531 = vpop.f32.mrf.mxu0
        %v532 = vadd.f32 %v519, %v531
        %v533 = vpop.f32.mrf.mxu0
        %534 = vdwg.mxu0
        %535 = vst [vmem:[%s140] sm:$0xf] %v532
        %s536 = smul.u32 %s29, 2
        %s537 = sadd.s32 %s536, 1
        %s538 = smul.u32 %s537, 6
        %s539 = sld [smem:[#allocation3 + %s538]]
        %s540 = sadd.s32 %s538, 1
        %s541 = sld [smem:[#allocation3 + %s540]]
        %s542 = sadd.s32 %s538, 2
        %s543 = sld [smem:[#allocation3 + %s542]]
        %s544 = sadd.s32 %s538, 3
        %s545 = sld [smem:[#allocation3 + %s544]]
        %s546 = sadd.s32 %s538, 4
        %s547 = sld [smem:[#allocation3 + %s546]]
        %s548 = sadd.s32 %s538, 5
        %s549 = sld [smem:[#allocation3 + %s548]]
        %v550 = vstv %s539
        %v551 = vmul.f32 %v550, %v165
        %v552 = vstv %s541
        %v553 = vmul.f32 %v552, %v161
        %v554 = vadd.f32 %v551, %v553
        %v555 = vstv %s543
        %v556 = vadd.f32 %v554, %v555
        %v557 = vstv %s545
        %v558 = vmul.f32 %v557, %v165
        %v559 = vstv %s547
        %v560 = vmul.f32 %v559, %v161
        %v561 = vadd.f32 %v558, %v560
        %v562 = vstv %s549
        %v563 = vadd.f32 %v561, %v562
        %v564 = vadd.f32 %v556, 1.0
        %v565 = vmul.f32 %v564, 16.0
        %v566 = vsub.f32 %v565, 1.0
        %v567 = vmul.f32 %v566, 0.5
        %v568 = vadd.f32 %v563, 1.0
        %v569 = vmul.f32 %v568, 16.0
        %v570 = vsub.f32 %v569, 1.0
        %v571 = vmul.f32 %v570, 0.5
        %v572 = vfloor.f32 %v567
        %v573 = vfloor.f32 %v571
        %v574 = vsub.f32 %v567, %v572
        %v575 = vsub.f32 1.0, %v574
        %v576 = vsub.f32 %v571, %v573
        %v577 = vsub.f32 1.0, %v576
        %v578 = vcvt.f32.s32.to.zero.pseudo %v572
        %v579 = vcvt.f32.s32.to.zero.pseudo %v573
        %v580 = vadd.s32 %v578, 1
        %v581 = vadd.s32 %v579, 1
        %vm582 = vcmp.eq.s32.totalorder %v579, 0
        %vm583 = vcmp.eq.s32.totalorder %v579, 1
        %vm584 = vcmp.eq.s32.totalorder %v579, 2
        %vm585 = vcmp.eq.s32.totalorder %v579, 3
        %vm586 = vcmp.eq.s32.totalorder %v579, 4
        %vm587 = vcmp.eq.s32.totalorder %v579, 5
        %vm588 = vcmp.eq.s32.totalorder %v579, 6
        %vm589 = vcmp.eq.s32.totalorder %v579, 7
        %vm590 = vcmp.eq.s32.totalorder %v579, 8
        %vm591 = vcmp.eq.s32.totalorder %v579, 9
        %vm592 = vcmp.eq.s32.totalorder %v579, 10
        %vm593 = vcmp.eq.s32.totalorder %v579, 11
        %vm594 = vcmp.eq.s32.totalorder %v579, 12
        %vm595 = vcmp.eq.s32.totalorder %v579, 13
        %vm596 = vcmp.eq.s32.totalorder %v579, 14
        %vm597 = vcmp.eq.s32.totalorder %v579, 15
        %v598 = vsel %vm582, %v577, 0.0
        %v599 = vsel %vm583, %v577, 0.0
        %v600 = vsel %vm584, %v577, 0.0
        %v601 = vsel %vm585, %v577, 0.0
        %v602 = vsel %vm586, %v577, 0.0
        %v603 = vsel %vm587, %v577, 0.0
        %v604 = vsel %vm588, %v577, 0.0
        %v605 = vsel %vm589, %v577, 0.0
        %v606 = vsel %vm590, %v577, 0.0
        %v607 = vsel %vm591, %v577, 0.0
        %v608 = vsel %vm592, %v577, 0.0
        %v609 = vsel %vm593, %v577, 0.0
        %v610 = vsel %vm594, %v577, 0.0
        %v611 = vsel %vm595, %v577, 0.0
        %v612 = vsel %vm596, %v577, 0.0
        %v613 = vsel %vm597, %v577, 0.0
        %vm614 = vcmp.eq.s32.totalorder %v581, 0
        %vm615 = vcmp.eq.s32.totalorder %v581, 1
        %vm616 = vcmp.eq.s32.totalorder %v581, 2
        %vm617 = vcmp.eq.s32.totalorder %v581, 3
        %vm618 = vcmp.eq.s32.totalorder %v581, 4
        %vm619 = vcmp.eq.s32.totalorder %v581, 5
        %vm620 = vcmp.eq.s32.totalorder %v581, 6
        %vm621 = vcmp.eq.s32.totalorder %v581, 7
        %vm622 = vcmp.eq.s32.totalorder %v581, 8
        %vm623 = vcmp.eq.s32.totalorder %v581, 9
        %vm624 = vcmp.eq.s32.totalorder %v581, 10
        %vm625 = vcmp.eq.s32.totalorder %v581, 11
        %vm626 = vcmp.eq.s32.totalorder %v581, 12
        %vm627 = vcmp.eq.s32.totalorder %v581, 13
        %vm628 = vcmp.eq.s32.totalorder %v581, 14
        %vm629 = vcmp.eq.s32.totalorder %v581, 15
        %v630 = vsel %vm614, %v576, 0.0
        %v631 = vsel %vm615, %v576, 0.0
        %v632 = vsel %vm616, %v576, 0.0
        %v633 = vsel %vm617, %v576, 0.0
        %v634 = vsel %vm618, %v576, 0.0
        %v635 = vsel %vm619, %v576, 0.0
        %v636 = vsel %vm620, %v576, 0.0
        %v637 = vsel %vm621, %v576, 0.0
        %v638 = vsel %vm622, %v576, 0.0
        %v639 = vsel %vm623, %v576, 0.0
        %v640 = vsel %vm624, %v576, 0.0
        %v641 = vsel %vm625, %v576, 0.0
        %v642 = vsel %vm626, %v576, 0.0
        %v643 = vsel %vm627, %v576, 0.0
        %v644 = vsel %vm628, %v576, 0.0
        %v645 = vsel %vm629, %v576, 0.0
        %v646 = vadd.f32 %v598, %v630
        %v647 = vadd.f32 %v599, %v631
        %v648 = vadd.f32 %v600, %v632
        %v649 = vadd.f32 %v601, %v633
        %v650 = vadd.f32 %v602, %v634
        %v651 = vadd.f32 %v603, %v635
        %v652 = vadd.f32 %v604, %v636
        %v653 = vadd.f32 %v605, %v637
        %v654 = vadd.f32 %v606, %v638
        %v655 = vadd.f32 %v607, %v639
        %v656 = vadd.f32 %v608, %v640
        %v657 = vadd.f32 %v609, %v641
        %v658 = vadd.f32 %v610, %v642
        %v659 = vadd.f32 %v611, %v643
        %v660 = vadd.f32 %v612, %v644
        %v661 = vadd.f32 %v613, %v645
        %v662 = vpack.c.bf16 %v646, %v646
        %v663 = vpack.c.bf16 %v647, %v647
        %v664 = vpack.c.bf16 %v648, %v648
        %v665 = vpack.c.bf16 %v649, %v649
        %v666 = vpack.c.bf16 %v650, %v650
        %v667 = vpack.c.bf16 %v651, %v651
        %v668 = vpack.c.bf16 %v652, %v652
        %v669 = vpack.c.bf16 %v653, %v653
        %v670 = vpack.c.bf16 %v654, %v654
        %v671 = vpack.c.bf16 %v655, %v655
        %v672 = vpack.c.bf16 %v656, %v656
        %v673 = vpack.c.bf16 %v657, %v657
        %v674 = vpack.c.bf16 %v658, %v658
        %v675 = vpack.c.bf16 %v659, %v659
        %v676 = vpack.c.bf16 %v660, %v660
        %v677 = vpack.c.bf16 %v661, %v661
        %vm678 = vcmp.eq.s32.totalorder %v167, %v578
        %vm679 = vcmp.eq.s32.totalorder %v168, %v578
        %v680 = vsel %vm678, %v575, 0.0
        %v681 = vsel %vm679, %v575, 0.0
        %vm682 = vcmp.eq.s32.totalorder %v167, %v580
        %vm683 = vcmp.eq.s32.totalorder %v168, %v580
        %v684 = vsel %vm682, %v574, 0.0
        %v685 = vsel %vm683, %v574, 0.0
        %v686 = vadd.f32 %v680, %v684
        %v687 = vadd.f32 %v681, %v685
        %v688 = vpack.c.bf16 %v686, %v686
        %v689 = vpack.c.bf16 %v687, %v687
        %v690 = vunpack.c.l.bf16 %v662
        %v691 = vunpack.c.l.bf16 %v663
        %v692 = vunpack.c.l.bf16 %v664
        %v693 = vunpack.c.l.bf16 %v665
        %v694 = vunpack.c.l.bf16 %v666
        %v695 = vunpack.c.l.bf16 %v667
        %v696 = vunpack.c.l.bf16 %v668
        %v697 = vunpack.c.l.bf16 %v669
        %v698 = vunpack.c.l.bf16 %v670
        %v699 = vunpack.c.l.bf16 %v671
        %v700 = vunpack.c.l.bf16 %v672
        %v701 = vunpack.c.l.bf16 %v673
        %v702 = vunpack.c.l.bf16 %v674
        %v703 = vunpack.c.l.bf16 %v675
        %v704 = vunpack.c.l.bf16 %v676
        %v705 = vunpack.c.l.bf16 %v677
        %v706 = vunpack.c.l.bf16 %v688
        %v707 = vunpack.c.l.bf16 %v689
        %v708 = vmul.f32 %v690, %v706
        %v709 = vmul.f32 %v690, %v707
        %v710 = vmul.f32 %v691, %v706
        %v711 = vmul.f32 %v691, %v707
        %v712 = vmul.f32 %v692, %v706
        %v713 = vmul.f32 %v692, %v707
        %v714 = vmul.f32 %v693, %v706
        %v715 = vmul.f32 %v693, %v707
        %v716 = vmul.f32 %v694, %v706
        %v717 = vmul.f32 %v694, %v707
        %v718 = vmul.f32 %v695, %v706
        %v719 = vmul.f32 %v695, %v707
        %v720 = vmul.f32 %v696, %v706
        %v721 = vmul.f32 %v696, %v707
        %v722 = vmul.f32 %v697, %v706
        %v723 = vmul.f32 %v697, %v707
        %v724 = vmul.f32 %v698, %v706
        %v725 = vmul.f32 %v698, %v707
        %v726 = vmul.f32 %v699, %v706
        %v727 = vmul.f32 %v699, %v707
        %v728 = vmul.f32 %v700, %v706
        %v729 = vmul.f32 %v700, %v707
        %v730 = vmul.f32 %v701, %v706
        %v731 = vmul.f32 %v701, %v707
        %v732 = vmul.f32 %v702, %v706
        %v733 = vmul.f32 %v702, %v707
        %v734 = vmul.f32 %v703, %v706
        %v735 = vmul.f32 %v703, %v707
        %v736 = vmul.f32 %v704, %v706
        %v737 = vmul.f32 %v704, %v707
        %v738 = vmul.f32 %v705, %v706
        %v739 = vmul.f32 %v705, %v707
        %v740 = vpack.c.bf16 %v708, %v708
        %v741 = vpack.c.bf16 %v709, %v709
        %v742 = vpack.c.bf16 %v710, %v710
        %v743 = vpack.c.bf16 %v711, %v711
        %v744 = vpack.c.bf16 %v712, %v712
        %v745 = vpack.c.bf16 %v713, %v713
        %v746 = vpack.c.bf16 %v714, %v714
        %v747 = vpack.c.bf16 %v715, %v715
        %v748 = vpack.c.bf16 %v716, %v716
        %v749 = vpack.c.bf16 %v717, %v717
        %v750 = vpack.c.bf16 %v718, %v718
        %v751 = vpack.c.bf16 %v719, %v719
        %v752 = vpack.c.bf16 %v720, %v720
        %v753 = vpack.c.bf16 %v721, %v721
        %v754 = vpack.c.bf16 %v722, %v722
        %v755 = vpack.c.bf16 %v723, %v723
        %v756 = vpack.c.bf16 %v724, %v724
        %v757 = vpack.c.bf16 %v725, %v725
        %v758 = vpack.c.bf16 %v726, %v726
        %v759 = vpack.c.bf16 %v727, %v727
        %v760 = vpack.c.bf16 %v728, %v728
        %v761 = vpack.c.bf16 %v729, %v729
        %v762 = vpack.c.bf16 %v730, %v730
        %v763 = vpack.c.bf16 %v731, %v731
        %v764 = vpack.c.bf16 %v732, %v732
        %v765 = vpack.c.bf16 %v733, %v733
        %v766 = vpack.c.bf16 %v734, %v734
        %v767 = vpack.c.bf16 %v735, %v735
        %v768 = vpack.c.bf16 %v736, %v736
        %v769 = vpack.c.bf16 %v737, %v737
        %v770 = vpack.c.bf16 %v738, %v738
        %v771 = vpack.c.bf16 %v739, %v739
        %v772 = vrot.slane %v409, 2
        %v773 = vrot.slane %v410, 2
        %v808 = vunpack.c.l.b16 %v740
        %v809 = vunpack.c.l.b16 %v741
        %v810 = vunpack.c.l.b16 %v742
        %v811 = vunpack.c.l.b16 %v743
        %v812 = vunpack.c.l.b16 %v744
        %v813 = vunpack.c.l.b16 %v745
        %v814 = vunpack.c.l.b16 %v746
        %v815 = vunpack.c.l.b16 %v747
        %v816 = vunpack.c.l.b16 %v748
        %v817 = vunpack.c.l.b16 %v749
        %v818 = vunpack.c.l.b16 %v750
        %v819 = vunpack.c.l.b16 %v751
        %v820 = vunpack.c.l.b16 %v752
        %v821 = vunpack.c.l.b16 %v753
        %v822 = vunpack.c.l.b16 %v754
        %v823 = vunpack.c.l.b16 %v755
        %v824 = vunpack.c.l.b16 %v756
        %v825 = vunpack.c.l.b16 %v757
        %v826 = vunpack.c.l.b16 %v758
        %v827 = vunpack.c.l.b16 %v759
        %v828 = vunpack.c.l.b16 %v760
        %v829 = vunpack.c.l.b16 %v761
        %v830 = vunpack.c.l.b16 %v762
        %v831 = vunpack.c.l.b16 %v763
        %v832 = vunpack.c.l.b16 %v764
        %v833 = vunpack.c.l.b16 %v765
        %v834 = vunpack.c.l.b16 %v766
        %v835 = vunpack.c.l.b16 %v767
        %v836 = vunpack.c.l.b16 %v768
        %v837 = vunpack.c.l.b16 %v769
        %v838 = vunpack.c.l.b16 %v770
        %v839 = vunpack.c.l.b16 %v771
        %v840 = vpack.c.b16 %v809, %v808
        %v841 = vpack.c.b16 %v811, %v810
        %v842 = vpack.c.b16 %v813, %v812
        %v843 = vpack.c.b16 %v815, %v814
        %v844 = vpack.c.b16 %v817, %v816
        %v845 = vpack.c.b16 %v819, %v818
        %v846 = vpack.c.b16 %v821, %v820
        %v847 = vpack.c.b16 %v823, %v822
        %v848 = vpack.c.b16 %v825, %v824
        %v849 = vpack.c.b16 %v827, %v826
        %v850 = vpack.c.b16 %v829, %v828
        %v851 = vpack.c.b16 %v831, %v830
        %v852 = vpack.c.b16 %v833, %v832
        %v853 = vpack.c.b16 %v835, %v834
        %v854 = vpack.c.b16 %v837, %v836
        %v855 = vpack.c.b16 %v839, %v838
        %872 = vmatpush.bf16.msra.mxu0 %v847
        %873 = vmatpush.bf16.msra.mxu0 %v846
        %874 = vmatpush.bf16.msra.mxu0 %v845
        %875 = vmatpush.bf16.msra.mxu0 %v844
        %876 = vmatpush.bf16.msra.mxu0 %v843
        %877 = vmatpush.bf16.msra.mxu0 %v842
        %878 = vmatpush.bf16.msra.mxu0 %v841
        %879 = vmatpush.bf16.msra.mxu0 %v840
        %880 = vmatmul.bf16.gmra.mxu0 %v772
        %v881 = vpop.f32.mrf.mxu0
        %v882 = vadd.f32 0.0, %v881
        %v883 = vpop.f32.mrf.mxu0
        %884 = vdwg.mxu0
        %885 = vmatpush.bf16.msra.mxu0 %v855
        %886 = vmatpush.bf16.msra.mxu0 %v854
        %887 = vmatpush.bf16.msra.mxu0 %v853
        %888 = vmatpush.bf16.msra.mxu0 %v852
        %889 = vmatpush.bf16.msra.mxu0 %v851
        %890 = vmatpush.bf16.msra.mxu0 %v850
        %891 = vmatpush.bf16.msra.mxu0 %v849
        %892 = vmatpush.bf16.msra.mxu0 %v848
        %893 = vmatmul.bf16.gmra.mxu0 %v773
        %v894 = vpop.f32.mrf.mxu0
        %v895 = vadd.f32 %v882, %v894
        %v896 = vpop.f32.mrf.mxu0
        %897 = vdwg.mxu0
        %898 = vst [vmem:[%s140 + $0x4] sm:$0xf] %v895
        %s899 = sand.u32 %s73, 1
        %s900 = scalar_lea.sflag [#allocation6], %s899
        %s901 = sand.u32 %s73, 1
        %s902 = smul.addr %s901, 8
        %s903 = scalar_lea.vmem [#allocation7], %s902
        // Predicated region
        $region29: #{tpu_custom_call.1} parent=23 // pred_check
          %p904 = pneg %p83
        $region30: #{tpu_custom_call.1} parent=23 // pred_check_branch
          %906 = sbr.rel (%p904) target = $region32
        $region31: #{tpu_custom_call.1} parent=23 // pred_region
          %908 = vsyncadd %s900, 0
          %s909 = smul.addr %s29, 2
          %s910 = sadd.s32 %s30, %s909
          %s911 = smul.addr %s910, 8
          %s912 = scalar_lea.hbm %s2, %s911
          %s914 = sshll.u32 %s903, 4
          %s915 = int_to_ptr.vmem [resolvable:$true] %s914
          %s916 = sshll.u32 %s912, 4
          %s917 = int_to_ptr.hbm [resolvable:$true] %s916
          %919 = dma.vmem_to_hbm [thread:$0]  %s915, 128, %s917, %s900
        $region32: #{tpu_custom_call.1} parent=23 // pred_fallthru
          _
      $region24: #{tpu_custom_call.1} parent=5 // pred_fallthru
        _
      %p920 = scmp.le.s32.totalorder 2, %s20
      // Predicated region
      $region33: #{tpu_custom_call.1} parent=5 // pred_check
        %p921 = pneg %p920
      $region34: #{tpu_custom_call.1} parent=5 // pred_check_branch
        %923 = sbr.rel (%p921) target = $region36
      $region35: #{tpu_custom_call.1} parent=5 // pred_region
        %s924 = ssub.s32 %s20, 2
        // Predicated region
        $region37: #{tpu_custom_call.1} parent=35 // pred_check
          %p925 = pneg %p89
        $region38: #{tpu_custom_call.1} parent=35 // pred_check_branch
          %927 = sbr.rel (%p925) target = $region40
        $region39: #{tpu_custom_call.1} parent=35 // pred_region
          %s928 = sand.u32 %s74, 1
          %s929 = scalar_lea.sflag [#allocation6], %s928
          %s930 = sand.u32 %s74, 1
          %s931 = smul.addr %s930, 8
          %s932 = scalar_lea.vmem [#allocation7], %s931
          %934 = dma.done %s929, 128
        $region40: #{tpu_custom_call.1} parent=35 // pred_fallthru
          _
      $region36: #{tpu_custom_call.1} parent=5 // pred_fallthru
        _
    $region6: #{tpu_custom_call.1} parent=1 // loop_footer
      %s24 = sadd.s32 1, %s20
    $region7: #{tpu_custom_call.1} parent=1 // loop_footer_branch
      %19 = sbr.rel target = $region3
    $region8: #{tpu_custom_call.1} parent=1 // loop_exit
      _
    %935 = vsyncpa [#allocation5], 1
    %s936 = scalar_lea.sflag [#allocation5], 1
    %937 = vsyncpa %s936, 1
    %938 = vsyncpa [#allocation6], 1
    %s939 = scalar_lea.sflag [#allocation6], 1
    %940 = vsyncpa %s939, 1

</llo_original>
